<compile_context>
chip_gen: v5e
topology: v5e:2x2
jax: 0.10.0
libtpu: 0.0.40
codegen_flags: <defaults>
</compile_context>

<pallas_src>
import jax
import jax.numpy as jnp
from jax.experimental import pallas as pl
from jax.experimental.pallas import tpu as pltpu


def _split_dma_kernel(x_hbm, s0_hbm, s1_hbm, s2_hbm, sem):
    # x_hbm : (N, 3, HW) HBM ref (memory_space=pl.ANY)
    # s*_hbm: (N, 1, HW) HBM refs (memory_space=pl.ANY)
    # sem   : DMA semaphore array of shape (3,)
    copies = [
        pltpu.make_async_copy(x_hbm.at[:, c:c + 1, :], dst, sem.at[c])
        for c, dst in enumerate((s0_hbm, s1_hbm, s2_hbm))
    ]
    # Issue all three strided HBM->HBM DMAs, then wait; reads/writes of the
    # three channels overlap inside the DMA engine.
    for cp in copies:
        cp.start()
    for cp in copies:
        cp.wait()


def split_cat_forward(x):
    """Matches torch: (torch.cat(torch.split(v1,[1,1,1],1),1), torch.split(v1,[1,1,1],1)).

    The concatenation of the splits is the identity, so `x` itself is returned
    as the first output (aliased, no copy).  The Pallas kernel only produces
    the three channel splits, via direct HBM->HBM DMAs (no VMEM staging).
    """
    N, C, H, W = x.shape
    assert C == 3, "module splits dim=1 into [1,1,1] -> requires 3 channels"
    HW = H * W

    # Row-major (N, C, HW) view of the NCHW input; each channel is a
    # rectangular strided sub-region -> a single DMA per channel.
    x3 = x.reshape(N, C, HW)

    out_shape = jax.ShapeDtypeStruct((N, 1, HW), x.dtype)
    any_spec = pl.BlockSpec(memory_space=pl.ANY)

    s0, s1, s2 = pl.pallas_call(
        _split_dma_kernel,
        out_shape=(out_shape, out_shape, out_shape),
        in_specs=[any_spec],
        out_specs=(any_spec, any_spec, any_spec),
        scratch_shapes=[pltpu.SemaphoreType.DMA((3,))],
    )(x3)

    splits = tuple(s.reshape(N, 1, H, W) for s in (s0, s1, s2))
    # torch.cat(torch.split(v1, [1,1,1], 1), 1) == v1  ->  alias the input.
    return x, splits


if __name__ == "__main__":
    key = jax.random.PRNGKey(0)
    # Small NCHW input with 3 channels (required by split sizes [1,1,1]).
    x = jax.random.normal(key, (2, 3, 16, 16), dtype=jnp.float32)

    cat, splits = split_cat_forward(x)
    jax.block_until_ready((cat, splits))

    # Sanity checks against the reference semantics.
    assert cat.shape == (2, 3, 16, 16)
    assert all(s.shape == (2, 1, 16, 16) for s in splits)
    assert jnp.array_equal(cat, x)
    assert jnp.array_equal(splits[0], x[:, 0:1])
    assert jnp.array_equal(splits[1], x[:, 1:2])
    assert jnp.array_equal(splits[2], x[:, 2:3])

    print("KERNEL_OK")
</pallas_src>

<mosaic_0001>
module attributes {stable_mosaic.version = 11 : i64} {
  func.func @_split_dma_kernel(%arg0: memref<2x3x256xf32, #tpu.memory_space<any>>, %arg1: memref<2x1x256xf32, #tpu.memory_space<any>>, %arg2: memref<2x1x256xf32, #tpu.memory_space<any>>, %arg3: memref<2x1x256xf32, #tpu.memory_space<any>>, %arg4: memref<3x!tpu.dma_semaphore, #tpu.memory_space<semaphore_mem>>) attributes {dimension_semantics = [], scalar_prefetch = 0 : i64, scratch_operands = 1 : i64, tpu.core_type = #tpu.core_type<tc>} {
    %c0_i32 = arith.constant 0 : i32
    %c0_i32_0 = arith.constant 0 : i32
    %c0_i32_1 = arith.constant 0 : i32
    %c0_i32_2 = arith.constant 0 : i32
    %0 = tpu.memref_slice %arg0[%c0_i32_0, %c0_i32_1, %c0_i32_2] : memref<2x3x256xf32, #tpu.memory_space<any>> -> memref<2x1x256xf32, #tpu.memory_space<any>>
    %1 = tpu.memref_slice %arg4[%c0_i32] : memref<3x!tpu.dma_semaphore, #tpu.memory_space<semaphore_mem>> -> memref<1x!tpu.dma_semaphore, #tpu.memory_space<semaphore_mem>>
    %2 = tpu.memref_squeeze %1 : memref<1x!tpu.dma_semaphore, #tpu.memory_space<semaphore_mem>> -> memref<!tpu.dma_semaphore, #tpu.memory_space<semaphore_mem>>
    tpu.enqueue_dma source(%0 : memref<2x1x256xf32, #tpu.memory_space<any>>) target(%arg1 : memref<2x1x256xf32, #tpu.memory_space<any>>) target_semaphore(%2 : memref<!tpu.dma_semaphore, #tpu.memory_space<semaphore_mem>>)
    %c1_i32 = arith.constant 1 : i32
    %c0_i32_3 = arith.constant 0 : i32
    %c1_i32_4 = arith.constant 1 : i32
    %c0_i32_5 = arith.constant 0 : i32
    %3 = tpu.memref_slice %arg0[%c0_i32_3, %c1_i32_4, %c0_i32_5] : memref<2x3x256xf32, #tpu.memory_space<any>> -> memref<2x1x256xf32, #tpu.memory_space<any>>
    %4 = tpu.memref_slice %arg4[%c1_i32] : memref<3x!tpu.dma_semaphore, #tpu.memory_space<semaphore_mem>> -> memref<1x!tpu.dma_semaphore, #tpu.memory_space<semaphore_mem>>
    %5 = tpu.memref_squeeze %4 : memref<1x!tpu.dma_semaphore, #tpu.memory_space<semaphore_mem>> -> memref<!tpu.dma_semaphore, #tpu.memory_space<semaphore_mem>>
    tpu.enqueue_dma source(%3 : memref<2x1x256xf32, #tpu.memory_space<any>>) target(%arg2 : memref<2x1x256xf32, #tpu.memory_space<any>>) target_semaphore(%5 : memref<!tpu.dma_semaphore, #tpu.memory_space<semaphore_mem>>)
    %c2_i32 = arith.constant 2 : i32
    %c0_i32_6 = arith.constant 0 : i32
    %c2_i32_7 = arith.constant 2 : i32
    %c0_i32_8 = arith.constant 0 : i32
    %6 = tpu.memref_slice %arg0[%c0_i32_6, %c2_i32_7, %c0_i32_8] : memref<2x3x256xf32, #tpu.memory_space<any>> -> memref<2x1x256xf32, #tpu.memory_space<any>>
    %7 = tpu.memref_slice %arg4[%c2_i32] : memref<3x!tpu.dma_semaphore, #tpu.memory_space<semaphore_mem>> -> memref<1x!tpu.dma_semaphore, #tpu.memory_space<semaphore_mem>>
    %8 = tpu.memref_squeeze %7 : memref<1x!tpu.dma_semaphore, #tpu.memory_space<semaphore_mem>> -> memref<!tpu.dma_semaphore, #tpu.memory_space<semaphore_mem>>
    tpu.enqueue_dma source(%6 : memref<2x1x256xf32, #tpu.memory_space<any>>) target(%arg3 : memref<2x1x256xf32, #tpu.memory_space<any>>) target_semaphore(%8 : memref<!tpu.dma_semaphore, #tpu.memory_space<semaphore_mem>>)
    %c0_i32_9 = arith.constant 0 : i32
    %c0_i32_10 = arith.constant 0 : i32
    %c0_i32_11 = arith.constant 0 : i32
    %c0_i32_12 = arith.constant 0 : i32
    %9 = tpu.memref_slice %arg0[%c0_i32_10, %c0_i32_11, %c0_i32_12] : memref<2x3x256xf32, #tpu.memory_space<any>> -> memref<2x1x256xf32, #tpu.memory_space<any>>
    %10 = tpu.memref_slice %arg4[%c0_i32_9] : memref<3x!tpu.dma_semaphore, #tpu.memory_space<semaphore_mem>> -> memref<1x!tpu.dma_semaphore, #tpu.memory_space<semaphore_mem>>
    %11 = tpu.memref_squeeze %10 : memref<1x!tpu.dma_semaphore, #tpu.memory_space<semaphore_mem>> -> memref<!tpu.dma_semaphore, #tpu.memory_space<semaphore_mem>>
    tpu.wait_dma2 semaphore(%11 : memref<!tpu.dma_semaphore, #tpu.memory_space<semaphore_mem>>) src(%9 : memref<2x1x256xf32, #tpu.memory_space<any>>) dst(%arg1 : memref<2x1x256xf32, #tpu.memory_space<any>>)
    %c1_i32_13 = arith.constant 1 : i32
    %c0_i32_14 = arith.constant 0 : i32
    %c1_i32_15 = arith.constant 1 : i32
    %c0_i32_16 = arith.constant 0 : i32
    %12 = tpu.memref_slice %arg0[%c0_i32_14, %c1_i32_15, %c0_i32_16] : memref<2x3x256xf32, #tpu.memory_space<any>> -> memref<2x1x256xf32, #tpu.memory_space<any>>
    %13 = tpu.memref_slice %arg4[%c1_i32_13] : memref<3x!tpu.dma_semaphore, #tpu.memory_space<semaphore_mem>> -> memref<1x!tpu.dma_semaphore, #tpu.memory_space<semaphore_mem>>
    %14 = tpu.memref_squeeze %13 : memref<1x!tpu.dma_semaphore, #tpu.memory_space<semaphore_mem>> -> memref<!tpu.dma_semaphore, #tpu.memory_space<semaphore_mem>>
    tpu.wait_dma2 semaphore(%14 : memref<!tpu.dma_semaphore, #tpu.memory_space<semaphore_mem>>) src(%12 : memref<2x1x256xf32, #tpu.memory_space<any>>) dst(%arg2 : memref<2x1x256xf32, #tpu.memory_space<any>>)
    %c2_i32_17 = arith.constant 2 : i32
    %c0_i32_18 = arith.constant 0 : i32
    %c2_i32_19 = arith.constant 2 : i32
    %c0_i32_20 = arith.constant 0 : i32
    %15 = tpu.memref_slice %arg0[%c0_i32_18, %c2_i32_19, %c0_i32_20] : memref<2x3x256xf32, #tpu.memory_space<any>> -> memref<2x1x256xf32, #tpu.memory_space<any>>
    %16 = tpu.memref_slice %arg4[%c2_i32_17] : memref<3x!tpu.dma_semaphore, #tpu.memory_space<semaphore_mem>> -> memref<1x!tpu.dma_semaphore, #tpu.memory_space<semaphore_mem>>
    %17 = tpu.memref_squeeze %16 : memref<1x!tpu.dma_semaphore, #tpu.memory_space<semaphore_mem>> -> memref<!tpu.dma_semaphore, #tpu.memory_space<semaphore_mem>>
    tpu.wait_dma2 semaphore(%17 : memref<!tpu.dma_semaphore, #tpu.memory_space<semaphore_mem>>) src(%15 : memref<2x1x256xf32, #tpu.memory_space<any>>) dst(%arg3 : memref<2x1x256xf32, #tpu.memory_space<any>>)
    return
  }
}

</mosaic_0001>

<llo_original>
// kernel: tpu_custom_call.1
$region0: #{tpu_custom_call.1}
  #allocation0 [shape = 'u32[]', space=smem, size = 0x4, offset = 0x4, fixed_abs, tag = 'smem constant byte address 0x4 - core index']
  #allocation1 [shape = 'u32[72,128]{1,0:T(1,128)}', space=vmem, size = 0x9000, scoped, tag = 'internal scratch']
  #allocation2 [shape = 's32[3]{0}', space=sflag, size = 0xc, scoped, tag = 'scratch operand']
  #allocation3 [shape = 's32[]', space=sflag, size = 0x4, offset = 0, fixed_abs, tag = 'sflag constant byte address 0x0 - dummy sync flag']
  #allocation4 [shape = 's32[]', space=sflag, size = 0x4, offset = 0, fixed_abs, tag = 'sflag constant byte address 0x0 - dummy sync flag']
  #allocation5 [shape = 's32[]', space=sflag, size = 0x4, offset = 0, fixed_abs, tag = 'sflag constant byte address 0x0 - dummy sync flag']
  %s0 = inlined_call_operand.vmem [shape: f32[2,3,256], index: 0, kind: input, shape index: {}]
  %s1 = inlined_call_operand.hbm [shape: f32[2,1,256], index: 1, kind: output, shape index: {0}]
  %s2 = inlined_call_operand.hbm [shape: f32[2,1,256], index: 2, kind: output, shape index: {1}]
  %s3 = inlined_call_operand.hbm [shape: f32[2,1,256], index: 3, kind: output, shape index: {2}]
  %4 = xla_tuple %s1, %s2, %s3
  %s5 = sld [smem:[#allocation0]]
  $region2: #{tpu_custom_call.1} parent=0
    _
  %s7 = ssub.s32 1, %s5
  %s8 = scalar_select 0, %s7, %s5
  %s9 = sshll.u32 %s0, 4
  %s10 = int_to_ptr.vmem [resolvable:$true] %s9
  %s11 = sshll.u32 %s1, 4
  %s12 = int_to_ptr.hbm [resolvable:$true] %s11
  %16 = dma.vmem_to_hbm [thread:$0]  %s10, 64, %s12, [#allocation2], 64, 16, 1
  %s17 = scalar_lea.vmem %s0, 1
  %s18 = scalar_lea.sflag [#allocation2], 1
  %s19 = sshll.u32 %s17, 4
  %s20 = int_to_ptr.vmem [resolvable:$true] %s19
  %s21 = sshll.u32 %s2, 4
  %s22 = int_to_ptr.hbm [resolvable:$true] %s21
  %26 = dma.vmem_to_hbm [thread:$0]  %s20, 64, %s22, %s18, 64, 16, 1
  %s27 = scalar_lea.vmem %s0, 2
  %s28 = scalar_lea.sflag [#allocation2], 2
  %s29 = sshll.u32 %s27, 4
  %s30 = int_to_ptr.vmem [resolvable:$true] %s29
  %s31 = sshll.u32 %s3, 4
  %s32 = int_to_ptr.hbm [resolvable:$true] %s31
  %36 = dma.vmem_to_hbm [thread:$0]  %s30, 64, %s32, %s28, 64, 16, 1
  %s37 = smul.u32 2, 1
  %s38 = smul.u32 %s37, 2
  %s39 = sshll.u32 %s38, 4
  %40 = dma.done [#allocation2], %s39
  %s41 = sshll.u32 %s38, 4
  %42 = dma.done %s18, %s41
  %s43 = sshll.u32 %s38, 4
  %44 = dma.done %s28, %s43
  %45 = vsyncmov [#allocation2]
  %s46 = vpop.sfrf %45
  %p47 = scmp.eq.s32.totalorder %s46, 0
  %p48 = pneg %p47
  %50 = shalt.err (%p48)
  %s51 = scalar_lea.sflag [#allocation2], 1
  %52 = vsyncmov %s51
  %s53 = vpop.sfrf %52
  %p54 = scmp.eq.s32.totalorder %s53, 0
  %p55 = pneg %p54
  %57 = shalt.err (%p55)
  %s58 = scalar_lea.sflag [#allocation2], 2
  %59 = vsyncmov %s58
  %s60 = vpop.sfrf %59
  %p61 = scmp.eq.s32.totalorder %s60, 0
  %p62 = pneg %p61
  %64 = shalt.err (%p62)

</llo_original>
